<compile_context>
chip_gen: v7x
topology: tpu7x:2x2x1
jax: 0.10.0
libtpu: 0.0.40
codegen_flags: <defaults>
</compile_context>

<pallas_src>
import math
from functools import partial

import jax
import jax.numpy as jnp
from jax import lax
from jax.experimental import pallas as pl
from jax.experimental.pallas import tpu as pltpu

# ----------------------------- model hyper-params (small) -----------------------------
D_MODEL = 32
TGT_VOCAB = 11
LANES = 128  # TPU lane width; pad the vocab axis to this for lane-dense stores

NEG_BIG = -1e30  # effectively -inf for masked (padded) logits, without inf arithmetic


def vspec():
    return pl.BlockSpec(memory_space=pltpu.MemorySpace.VMEM)


# ------------------------------------ Pallas kernel ------------------------------------
def _generator_kernel(x_ref, w_ref, b_ref, o_ref, *, valid_n):
    """Fused: logits = x @ W + b ; out = log_softmax(logits) over the last axis.

    x_ref: [M, D]        (M = batch*seq rows)
    w_ref: [D, Npad]     (vocab padded to a multiple of 128 lanes)
    b_ref: [1, Npad]
    o_ref: [M, Npad]     (lane-dense store; padded columns hold garbage, sliced outside)

    `valid_n` is a static Python int (compile-time constant).
    """
    logits = jnp.dot(x_ref[...], w_ref[...], preferred_element_type=jnp.float32)
    logits = logits + b_ref[...]

    # Mask padded vocab columns so they never affect max / sum-exp.
    col = lax.broadcasted_iota(jnp.int32, logits.shape, 1)
    logits = jnp.where(col < valid_n, logits, NEG_BIG)

    # Stable log-softmax (matches F.log_softmax(..., dim=-1)).
    m = jnp.max(logits, axis=-1, keepdims=True)
    z = logits - m
    lse = jnp.log(jnp.sum(jnp.exp(z), axis=-1, keepdims=True))
    o_ref[...] = z - lse


# ------------------------------------ wrapper / init ------------------------------------
def init_generator_params(key, d_model=D_MODEL, vocab=TGT_VOCAB):
    """nn.Linear(d_model, vocab) init (U(-1/sqrt(d), 1/sqrt(d))), pre-padded/laid out
    once for the kernel: W as [d_model, Npad], b as [1, Npad] (padded bias = NEG_BIG)."""
    k1, k2 = jax.random.split(key)
    bound = 1.0 / math.sqrt(d_model)
    w = jax.random.uniform(k1, (d_model, vocab), jnp.float32, -bound, bound)
    b = jax.random.uniform(k2, (vocab,), jnp.float32, -bound, bound)

    n_pad = max(LANES, pl.cdiv(vocab, LANES) * LANES)
    w_pad = jnp.zeros((d_model, n_pad), jnp.float32).at[:, :vocab].set(w)
    b_pad = jnp.full((1, n_pad), NEG_BIG, jnp.float32).at[0, :vocab].set(b)
    # NOTE: no Python-int leaves in the params pytree -> nothing unexpectedly traced.
    return {"w": w, "b": b, "w_pad": w_pad, "b_pad": b_pad}


def generator_forward(params, x):
    """x: [B, S, d_model] -> log-probs [B, S, vocab]."""
    B, S, D = x.shape
    w_pad = params["w_pad"]
    b_pad = params["b_pad"]
    V = params["b"].shape[0]  # static Python int (from shape), not a traced value
    n_pad = w_pad.shape[1]
    M = B * S

    out_pad = pl.pallas_call(
        partial(_generator_kernel, valid_n=V),
        out_shape=jax.ShapeDtypeStruct((M, n_pad), jnp.float32),
        in_specs=[vspec(), vspec(), vspec()],
        out_specs=vspec(),
    )(x.reshape(M, D), w_pad, b_pad)

    return out_pad[:, :V].reshape(B, S, V)


# ---------------------------------------- main ------------------------------------------
if __name__ == "__main__":
    root = jax.random.PRNGKey(0)
    k_params, k_data = jax.random.split(root)

    params = init_generator_params(k_params)

    B, S = 2, 8
    x = jax.random.normal(k_data, (B, S, D_MODEL), jnp.float32)

    fwd = jax.jit(generator_forward)
    out = fwd(params, x)
    jax.block_until_ready(out)

    # Reference check (plain JAX) against the fused Pallas kernel.
    ref = jax.nn.log_softmax(
        jnp.einsum("bsd,dv->bsv", x, params["w"]) + params["b"], axis=-1
    )

    assert out.shape == (B, S, TGT_VOCAB)
    assert bool(jnp.all(jnp.isfinite(out)))
    assert bool(jnp.allclose(out, ref, atol=1e-5, rtol=1e-5))
    # log-probs should (approximately) exponentiate-sum to 1 per row
    assert bool(jnp.allclose(jnp.sum(jnp.exp(out), axis=-1), 1.0, atol=1e-5))

    print("KERNEL_OK")
</pallas_src>

<mosaic_0001>
module attributes {stable_mosaic.version = 11 : i64} {
  func.func @_generator_kernel(%arg0: memref<16x32xf32, #tpu.memory_space<vmem>>, %arg1: memref<32x128xf32, #tpu.memory_space<vmem>>, %arg2: memref<1x128xf32, #tpu.memory_space<vmem>>, %arg3: memref<16x128xf32, #tpu.memory_space<vmem>>) attributes {dimension_semantics = [], scalar_prefetch = 0 : i64, scratch_operands = 0 : i64, tpu.core_type = #tpu.core_type<tc>} {
    %c0 = arith.constant 0 : index
    %c0_0 = arith.constant 0 : index
    %0 = vector.load %arg0[%c0, %c0_0] : memref<16x32xf32, #tpu.memory_space<vmem>>, vector<16x32xf32>
    %c0_1 = arith.constant 0 : index
    %c0_2 = arith.constant 0 : index
    %1 = vector.load %arg1[%c0_1, %c0_2] : memref<32x128xf32, #tpu.memory_space<vmem>>, vector<32x128xf32>
    %cst = arith.constant dense<0.000000e+00> : vector<16x128xf32>
    %2 = tpu.matmul %0, %1, %cst {dimension_numbers = #tpu.dot_dimension_numbers<[1], [0], [0], [1], [0, 0, 1, 1], [], []>} : vector<16x32xf32>, vector<32x128xf32>, vector<16x128xf32> -> vector<16x128xf32>
    %c0_3 = arith.constant 0 : index
    %c0_4 = arith.constant 0 : index
    %3 = vector.load %arg2[%c0_3, %c0_4] : memref<1x128xf32, #tpu.memory_space<vmem>>, vector<1x128xf32>
    %4 = vector.broadcast %3 : vector<1x128xf32> to vector<16x128xf32>
    %5 = arith.addf %2, %4 : vector<16x128xf32>
    %6 = tpu.iota {dimensions = array<i32: 1>} : vector<16x128xi32>
    %c11_i32 = arith.constant 11 : i32
    %7 = vector.broadcast %c11_i32 : i32 to vector<16x128xi32>
    %8 = arith.cmpi slt, %6, %7 : vector<16x128xi32>
    %cst_5 = arith.constant -1.000000e+30 : f32
    %9 = vector.broadcast %cst_5 : f32 to vector<16x128xf32>
    %10 = arith.select %8, %5, %9 : vector<16x128xi1>, vector<16x128xf32>
    %cst_6 = arith.constant dense<0xFF800000> : vector<16xf32>
    %11 = vector.multi_reduction <maximumf>, %10, %cst_6 [1] : vector<16x128xf32> to vector<16xf32>
    %12 = vector.shape_cast %11 : vector<16xf32> to vector<16x1xf32>
    %13 = vector.broadcast %12 : vector<16x1xf32> to vector<16x128xf32>
    %14 = arith.subf %10, %13 : vector<16x128xf32>
    %15 = math.exp %14 : vector<16x128xf32>
    %cst_7 = arith.constant dense<0.000000e+00> : vector<16xf32>
    %16 = vector.multi_reduction <add>, %15, %cst_7 [1] : vector<16x128xf32> to vector<16xf32>
    %17 = vector.shape_cast %16 : vector<16xf32> to vector<16x1xf32>
    %18 = math.log %17 : vector<16x1xf32>
    %19 = vector.broadcast %18 : vector<16x1xf32> to vector<16x128xf32>
    %20 = arith.subf %14, %19 : vector<16x128xf32>
    %c0_8 = arith.constant 0 : index
    %c0_9 = arith.constant 0 : index
    %21 = vector.load %arg3[%c0_8, %c0_9] : memref<16x128xf32, #tpu.memory_space<vmem>>, vector<16x128xf32>
    tpu.vector_store %arg3[%c0_8, %c0_9], %20 {strides = array<i32>} : memref<16x128xf32, #tpu.memory_space<vmem>>, vector<16x128xf32>,
    return
  }
}

</mosaic_0001>

<llo_original>
// kernel: generator_forward.1
$region0: #{generator_forward.1}
  #allocation0 [shape = 'u32[]', space=smem, size = 0x4, offset = 0x4, fixed_abs, tag = 'smem constant byte address 0x4 - core index']
  #allocation1 [shape = 'u32[144,128]{1,0:T(1,128)}', space=vmem, size = 0x12000, scoped, tag = 'internal scratch']
  %s0 = inlined_call_operand.hbm [shape: f32[16,32], index: 0, kind: input, shape index: {}]
  %s1 = inlined_call_operand.hbm [shape: f32[32,128], index: 1, kind: input, shape index: {}]
  %s2 = inlined_call_operand.vmem [shape: f32[1,128], index: 2, kind: input, shape index: {}]
  %s3 = inlined_call_operand.vmem [shape: f32[16,128], index: 3, kind: output, shape index: {}]
  %s4 = sld [smem:[#allocation0]]
  $region30: #{generator_forward.1} parent=0
    _
  %s6 = ssub.s32 1, %s4
  %s7 = scalar_select 0, %s6, %s4
  $region1: #{generator_forward.1} parent=0
    #allocation2 [shape = 'u8[8192]{0}', space=vmem, size = 0x2000, scoped, tag = 'input window, operand 0, single buffered']
    #allocation3 [shape = 's32[1]{0}', space=sflag, size = 0x4, scoped, tag = 'scoped memory for generator_forward.1']
    #allocation4 [shape = 'u8[16384]{0}', space=vmem, size = 0x4000, scoped, tag = 'input window, operand 1, single buffered']
    #allocation5 [shape = 's32[1]{0}', space=sflag, size = 0x4, scoped, tag = 'scoped memory for generator_forward.1']
    %8 = vsyncpa [#allocation3], 0
    %9 = vsyncpa [#allocation5], 0
    // Predicated region
    $region2: #{generator_forward.1} parent=1 // pred_check
      _
    $region3: #{generator_forward.1} parent=1 // pred_check_branch
      %11 = sbr.rel (0) target = $region5
    $region4: #{generator_forward.1} parent=1 // pred_region
      %s13 = ssub.s32 256, 256
      %14 = vsyncadd [#allocation3], %s13
      %s15 = sshll.u32 [#allocation2], 4
      %s16 = int_to_ptr.vmem [resolvable:$true] %s15
      %21 = dma.hbm_to_vmem [thread:$0]  %s0, 256, %s16, [#allocation3], 128, 128, 8
    $region5: #{generator_forward.1} parent=1 // pred_fallthru
      _
    // Predicated region
    $region6: #{generator_forward.1} parent=1 // pred_check
      _
    $region7: #{generator_forward.1} parent=1 // pred_check_branch
      %23 = sbr.rel (0) target = $region9
    $region8: #{generator_forward.1} parent=1 // pred_region
      %s25 = ssub.s32 512, 512
      %26 = vsyncadd [#allocation5], %s25
      %s27 = sshll.u32 [#allocation4], 4
      %s28 = int_to_ptr.vmem [resolvable:$true] %s27
      %33 = dma.hbm_to_vmem [thread:$0]  %s1, 512, %s28, [#allocation5], 128, 128, 8
    $region9: #{generator_forward.1} parent=1 // pred_fallthru
      _
    // Predicated region
    $region10: #{generator_forward.1} parent=1 // pred_check
      _
    $region11: #{generator_forward.1} parent=1 // pred_check_branch
      %35 = sbr.rel (0) target = $region13
    $region12: #{generator_forward.1} parent=1 // pred_region
      _
    $region13: #{generator_forward.1} parent=1 // pred_fallthru
      _
    // Predicated region
    $region14: #{generator_forward.1} parent=1 // pred_check
      _
    $region15: #{generator_forward.1} parent=1 // pred_check_branch
      %37 = sbr.rel (0) target = $region17
    $region16: #{generator_forward.1} parent=1 // pred_region
      %38 = dma.done [#allocation3], 256
    $region17: #{generator_forward.1} parent=1 // pred_fallthru
      _
    // Predicated region
    $region18: #{generator_forward.1} parent=1 // pred_check
      _
    $region19: #{generator_forward.1} parent=1 // pred_check_branch
      %40 = sbr.rel (0) target = $region21
    $region20: #{generator_forward.1} parent=1 // pred_region
      %41 = dma.done [#allocation5], 512
    $region21: #{generator_forward.1} parent=1 // pred_fallthru
      _
    %v42 = vld [vmem:[#allocation2] sm:$0xff]
    %v43 = vld [vmem:[#allocation2 + $0x8] sm:$0xff]
    %v44 = vld [vmem:[#allocation4] sm:$0xff]
    %v45 = vld [vmem:[#allocation4 + $0x8] sm:$0xff]
    %v46 = vld [vmem:[#allocation4 + $0x10] sm:$0xff]
    %v47 = vld [vmem:[#allocation4 + $0x18] sm:$0xff]
    %v48 = vld [vmem:[%s2] sm:$0x1]
    %v50 = vlaneseq
    %v51 = vshrl.u32 %v50, 7
    %v52 = vsub.s32 0, %v51
    %v53 = vrot.slane %v48, %v52
    %vm55 = vcmask 261120
    %v57 = vsel %vm55, %v42, 0
    %v60 = vsel %vm55, %v43, 0
    %62 = vmatprep.subr.mxu0 0.0
    %63 = vmatpush1.msra.mxu0 %v44
    %64 = vmatprep.subr.mxu0 0.0
    %65 = vmatpush1.msra.mxu0 %v45
    %66 = vmatprep.subr.mxu0 0.0
    %67 = vmatpush1.msra.mxu0 %v46
    %68 = vmatprep.subr.mxu0 0.0
    %69 = vmatpush1.msra.mxu0 %v47
    %70 = vmatprep.subr.mxu0 0.0
    %71 = vmatpush1.msra.mxu0 0.0
    %72 = vmatprep.subr.mxu0 0.0
    %73 = vmatpush1.msra.mxu0 0.0
    %74 = vmatprep.subr.mxu0 0.0
    %75 = vmatpush1.msra.mxu0 0.0
    %76 = vmatprep.subr.mxu0 0.0
    %77 = vmatpush1.msra.mxu0 0.0
    %78 = vmatprep.subr.mxu0 0.0
    %79 = vmatpush1.msra.mxu0 0.0
    %80 = vmatprep.subr.mxu0 0.0
    %81 = vmatpush1.msra.mxu0 0.0
    %82 = vmatprep.subr.mxu0 0.0
    %83 = vmatpush1.msra.mxu0 0.0
    %84 = vmatprep.subr.mxu0 0.0
    %85 = vmatpush1.msra.mxu0 0.0
    %86 = vmatprep.subr.mxu0 0.0
    %87 = vmatpush1.msra.mxu0 0.0
    %88 = vmatprep.subr.mxu0 0.0
    %89 = vmatpush1.msra.mxu0 0.0
    %90 = vmatprep.subr.mxu0 0.0
    %91 = vmatpush1.msra.mxu0 0.0
    %92 = vmatprep.subr.mxu0 0.0
    %93 = vmatpush1.msra.mxu0 0.0
    %94 = vmatprep.subr.mxu0 0.0
    %95 = vmatpush1.msra.mxu0 0.0
    %96 = vmatprep.subr.mxu0 0.0
    %97 = vmatpush1.msra.mxu0 0.0
    %98 = vmatprep.subr.mxu0 0.0
    %99 = vmatpush1.msra.mxu0 0.0
    %100 = vmatprep.subr.mxu0 0.0
    %101 = vmatpush1.msra.mxu0 0.0
    %102 = vmatprep.subr.mxu0 0.0
    %103 = vmatpush1.msra.mxu0 0.0
    %104 = vmatprep.subr.mxu0 0.0
    %105 = vmatpush1.msra.mxu0 0.0
    %106 = vmatprep.subr.mxu0 0.0
    %107 = vmatpush1.msra.mxu0 0.0
    %108 = vmatprep.subr.mxu0 0.0
    %109 = vmatpush1.msra.mxu0 0.0
    %110 = vmatprep.subr.mxu0 0.0
    %111 = vmatpush1.msra.mxu0 0.0
    %112 = vmatprep.subr.mxu0 0.0
    %113 = vmatpush1.msra.mxu0 0.0
    %114 = vmatprep.subr.mxu0 0.0
    %115 = vmatpush1.msra.mxu0 0.0
    %116 = vmatprep.subr.mxu0 0.0
    %117 = vmatpush1.msra.mxu0 0.0
    %118 = vmatprep.subr.mxu0 0.0
    %119 = vmatpush1.msra.mxu0 0.0
    %120 = vmatprep.subr.mxu0 0.0
    %121 = vmatpush1.msra.mxu0 0.0
    %122 = vmatprep.subr.mxu0 0.0
    %123 = vmatpush1.msra.mxu0 0.0
    %124 = vmatprep.subr.mxu0 0.0
    %125 = vmatpush1.msra.mxu0 0.0
    %126 = vmatprep.mubr.f32.mxu0 0.0
    %127 = vmatmul.mubr.f32.gmra.mrb[0].mxu0 %v57
    %v128 = vpop.f32.mrb[0].mxu0
    %v129 = vadd.f32 %v53, %v128
    %v130 = vpop.f32.mrb[0].mxu0
    %131 = vmatprep.mubr.f32.mxu0 0.0
    %132 = vmatmul.mubr.f32.gmra.mrb[0].mxu0 %v60
    %v133 = vpop.f32.mrb[0].mxu0
    %v134 = vadd.f32 %v53, %v133
    %v135 = vpop.f32.mrb[0].mxu0
    %136 = vdwg.mxu0
    %v137 = vlaneseq
    %v138 = vand.u32 %v137, 127
    %vm139 = vcmp.lt.s32.totalorder %v138, 11
    %v140 = vsel %vm139, %v129, -1e+30
    %v141 = vsel %vm139, %v134, -1e+30
    %142 = vmax.xlane.f32.xlu0 %v140
    %v143 = vpop.xlane.xlu0 %142
    %144 = vmax.xlane.f32.xlu0 %v141
    %v145 = vpop.xlane.xlu0 %144
    %v146 = vsub.f32 %v140, %v143
    %v147 = vsub.f32 %v141, %v145
    %v148 = vmul.f32 %v146, 1.442695
    %v149 = vpow.pop %v148
    %v150 = vmul.f32 %v147, 1.442695
    %v151 = vpow.pop %v150
    %152 = vadd.xlane.f32.xlu0 %v149
    %v153 = vpop.xlane.xlu0 %152
    %154 = vadd.xlane.f32.xlu0 %v151
    %v155 = vpop.xlane.xlu0 %154
    %v156 = vlog2.pop %v153
    %v157 = vmul.f32 %v156, 0.6931472
    %v158 = vlog2.pop %v155
    %v159 = vmul.f32 %v158, 0.6931472
    %v160 = vsub.f32 %v146, %v157
    %v161 = vsub.f32 %v147, %v159
    %162 = vst [vmem:[%s3] sm:$0xff] %v160
    %163 = vst [vmem:[%s3 + $0x8] sm:$0xff] %v161
    // Predicated region
    $region22: #{generator_forward.1} parent=1 // pred_check
      _
    $region23: #{generator_forward.1} parent=1 // pred_check_branch
      %165 = sbr.rel (0) target = $region25
    $region24: #{generator_forward.1} parent=1 // pred_region
      _
    $region25: #{generator_forward.1} parent=1 // pred_fallthru
      _
    // Predicated region
    $region26: #{generator_forward.1} parent=1 // pred_check
      _
    $region27: #{generator_forward.1} parent=1 // pred_check_branch
      %167 = sbr.rel (0) target = $region29
    $region28: #{generator_forward.1} parent=1 // pred_region
      _
    $region29: #{generator_forward.1} parent=1 // pred_fallthru
      _
    %168 = vsyncpa [#allocation3], 1
    %169 = vsyncpa [#allocation5], 1

</llo_original>
